<compile_context>
chip_gen: v7x
topology: tpu7x:2x2x1
jax: 0.10.0
libtpu: 0.0.40
codegen_flags: <defaults>
</compile_context>

<pallas_src>
import jax
import jax.numpy as jnp
from jax.experimental import pallas as pl
from jax.experimental.pallas import tpu as pltpu


def _targeted_loss_kernel(z_ref, lm_ref, ltm_ref, out_ref, acc_ref):
    n = pl.program_id(1)
    n_last = pl.num_programs(1) - 1

    # Fresh accumulator for every batch item (scratch persists across steps).
    @pl.when(n == 0)
    def _():
        acc_ref[...] = jnp.zeros_like(acc_ref)

    z = z_ref[0].astype(jnp.float32)   # (C, TN)  native dtype -> f32 in-kernel
    lm = lm_ref[0]                     # (1, TN)  int32, -1 where cond is False / padded
    ltm = ltm_ref[0]                   # (1, TN)  int32

    C, TN = z.shape
    # TODO(synk): could be hoisted into a per-batch VMEM scratch to shave one
    # VPU iota per vreg per step when VALU-bound.
    ch = jax.lax.broadcasted_iota(jnp.int32, (C, TN), 0)

    contrib = jnp.where(lm == ch, z, 0.0) - jnp.where(ltm == ch, z, 0.0)
    acc_ref[...] += contrib            # pure VALU adds; no per-step reduction

    # Single cross-lane reduction per batch item, at the last spatial tile.
    @pl.when(n == n_last)
    def _():
        total = jnp.sum(acc_ref[...])
        out_ref[...] = jnp.zeros_like(out_ref) + total


def targeted_loss(z, condition, l, l_target, *, tile_n=None,
                  max_tile_bytes=2 * 1024 * 1024):
    """z: (B, C, H, W) float (any dtype); condition: (B, H, W) bool;
    l, l_target: (B, H, W) int.  Returns a scalar f32 loss."""
    B, C, H, W = z.shape
    N = H * W
    itemsize = jnp.dtype(z.dtype).itemsize

    # Fold the condition into the labels: -1 never matches a channel index,
    # so masked-out pixels contribute exactly 0 (same as the PyTorch gather).
    l_m = jnp.where(condition, l, -1).reshape(B, 1, N).astype(jnp.int32)
    lt_m = jnp.where(condition, l_target, -1).reshape(B, 1, N).astype(jnp.int32)
    z2 = z.reshape(B, C, N)  # keep native dtype (bf16 stays bf16)

    # Lane-aligned spatial tile: big enough to amortize per-step overhead,
    # small enough to bound VMEM (z double-buffered + f32 scratch).
    n_pad128 = -(-N // 128) * 128
    if tile_n is None:
        tn_cap = max(128, (max_tile_bytes // (C * itemsize)) // 128 * 128)
        TN = min(tn_cap, n_pad128)
    else:
        TN = tile_n
    assert TN % 128 == 0, "tile_n must be a multiple of 128"
    N_pad = -(-N // TN) * TN
    n_tiles = N_pad // TN

    pad = N_pad - N
    if pad:
        z2 = jnp.pad(z2, ((0, 0), (0, 0), (0, pad)))
        # padded pixels get the -1 sentinel -> contribute 0
        l_m = jnp.pad(l_m, ((0, 0), (0, 0), (0, pad)), constant_values=-1)
        lt_m = jnp.pad(lt_m, ((0, 0), (0, 0), (0, pad)), constant_values=-1)

    out = pl.pallas_call(
        _targeted_loss_kernel,
        out_shape=jax.ShapeDtypeStruct((B, 1, 128), jnp.float32),
        grid_spec=pltpu.PrefetchScalarGridSpec(
            num_scalar_prefetch=0,
            grid=(B, n_tiles),
            in_specs=[
                pl.BlockSpec((1, C, TN), lambda b, n: (b, 0, n)),
                pl.BlockSpec((1, 1, TN), lambda b, n: (b, 0, n)),
                pl.BlockSpec((1, 1, TN), lambda b, n: (b, 0, n)),
            ],
            out_specs=pl.BlockSpec((1, 1, 128), lambda b, n: (b, 0, 0)),
            scratch_shapes=[pltpu.VMEM((C, TN), jnp.float32)],
        ),
        compiler_params=pltpu.CompilerParams(
            # batch axis parallel (megacore sharding on v7x), spatial tiles
            # are the accumulation axis -> arbitrary.
            dimension_semantics=("parallel", "arbitrary"),
        ),
    )(z2, l_m, lt_m)

    return jnp.sum(out[:, 0, 0])


def _reference_loss(z, condition, l, l_target):
    """Pure-JAX reference mirroring the PyTorch gather semantics."""
    C = z.shape[1]
    zf = z.astype(jnp.float32)
    oh_good = jax.nn.one_hot(l, C, axis=1, dtype=jnp.float32)        # (B, C, H, W)
    oh_bad = jax.nn.one_hot(l_target, C, axis=1, dtype=jnp.float32)  # (B, C, H, W)
    mask = condition.astype(jnp.float32)[:, None, :, :]              # (B, 1, H, W)
    return jnp.sum(mask * (oh_good - oh_bad) * zf)


if __name__ == "__main__":
    # Small shapes consistent with the module's indexing: z NCHW, labels/cond NHW.
    # N = 288 -> padded to 384 with tile_n=128 -> 3 spatial tiles (exercises
    # tiling, padding and the per-batch flush path).
    B, C, H, W = 2, 4, 16, 18

    key = jax.random.PRNGKey(0)
    kz, kc, kl, kt = jax.random.split(key, 4)

    z = jax.random.normal(kz, (B, C, H, W), dtype=jnp.float32)
    condition = jax.random.bernoulli(kc, p=0.5, shape=(B, H, W))
    l = jax.random.randint(kl, (B, H, W), 0, C, dtype=jnp.int32)
    l_target = jax.random.randint(kt, (B, H, W), 0, C, dtype=jnp.int32)

    # f32 path (exact comparison against the reference)
    loss = targeted_loss(z, condition, l, l_target, tile_n=128)
    jax.block_until_ready(loss)
    ref = _reference_loss(z, condition, l, l_target)
    assert jnp.allclose(loss, ref, rtol=1e-5, atol=1e-4), (loss, ref)

    # Native-dtype path: z stays bf16 on the wire, f32 accumulation in-kernel.
    z_bf16 = z.astype(jnp.bfloat16)
    loss_bf = targeted_loss(z_bf16, condition, l, l_target)
    jax.block_until_ready(loss_bf)
    ref_bf = _reference_loss(z_bf16.astype(jnp.float32), condition, l, l_target)
    assert jnp.allclose(loss_bf, ref_bf, rtol=1e-3, atol=1e-2), (loss_bf, ref_bf)

    print("KERNEL_OK")
</pallas_src>

<mosaic_0001>
module attributes {stable_mosaic.version = 11 : i64} {
  func.func @_targeted_loss_kernel(%arg0: i32, %arg1: i32, %arg2: memref<1x4x128xf32, #tpu.memory_space<vmem>>, %arg3: memref<1x1x128xi32, #tpu.memory_space<vmem>>, %arg4: memref<1x1x128xi32, #tpu.memory_space<vmem>>, %arg5: memref<1x1x128xf32, #tpu.memory_space<vmem>>, %arg6: memref<4x128xf32, #tpu.memory_space<vmem>>) attributes {dimension_semantics = [#tpu.dimension_semantics<parallel>, #tpu.dimension_semantics<arbitrary>], iteration_bounds = array<i64: 2, 3>, scalar_prefetch = 0 : i64, scratch_operands = 1 : i64, tpu.core_type = #tpu.core_type<tc>, window_params = [{transform_indices = @transform_0, window_bounds = array<i64: 1, 4, 128>}, {transform_indices = @transform_1, window_bounds = array<i64: 1, 1, 128>}, {transform_indices = @transform_2, window_bounds = array<i64: 1, 1, 128>}, {transform_indices = @transform_3, window_bounds = array<i64: 1, 1, 128>}]} {
    %c0_i32 = arith.constant 0 : i32
    %0 = arith.cmpi eq, %arg1, %c0_i32 : i32
    %1 = arith.extui %0 : i1 to i32
    %c0_i32_0 = arith.constant 0 : i32
    %2 = arith.cmpi ne, %1, %c0_i32_0 : i32
    scf.if %2 {
      %cst_15 = arith.constant 0.000000e+00 : f32
      %25 = vector.broadcast %cst_15 : f32 to vector<4x128xf32>
      %c0_16 = arith.constant 0 : index
      %c0_17 = arith.constant 0 : index
      %26 = vector.load %arg6[%c0_16, %c0_17] : memref<4x128xf32, #tpu.memory_space<vmem>>, vector<4x128xf32>
      tpu.vector_store %arg6[%c0_16, %c0_17], %25 {strides = array<i32>} : memref<4x128xf32, #tpu.memory_space<vmem>>, vector<4x128xf32>,
    } else {
    }
    %c0 = arith.constant 0 : index
    %c0_1 = arith.constant 0 : index
    %c0_2 = arith.constant 0 : index
    %3 = vector.load %arg2[%c0, %c0_1, %c0_2] : memref<1x4x128xf32, #tpu.memory_space<vmem>>, vector<1x4x128xf32>
    %4 = vector.shape_cast %3 : vector<1x4x128xf32> to vector<4x128xf32>
    %c0_3 = arith.constant 0 : index
    %c0_4 = arith.constant 0 : index
    %c0_5 = arith.constant 0 : index
    %5 = vector.load %arg3[%c0_3, %c0_4, %c0_5] : memref<1x1x128xi32, #tpu.memory_space<vmem>>, vector<1x1x128xi32>
    %6 = vector.shape_cast %5 : vector<1x1x128xi32> to vector<1x128xi32>
    %c0_6 = arith.constant 0 : index
    %c0_7 = arith.constant 0 : index
    %c0_8 = arith.constant 0 : index
    %7 = vector.load %arg4[%c0_6, %c0_7, %c0_8] : memref<1x1x128xi32, #tpu.memory_space<vmem>>, vector<1x1x128xi32>
    %8 = vector.shape_cast %7 : vector<1x1x128xi32> to vector<1x128xi32>
    %9 = tpu.iota {dimensions = array<i32: 0>} : vector<4x128xi32>
    %10 = vector.broadcast %6 : vector<1x128xi32> to vector<4x128xi32>
    %11 = arith.cmpi eq, %10, %9 : vector<4x128xi32>
    %cst = arith.constant 0.000000e+00 : f32
    %12 = vector.broadcast %cst : f32 to vector<4x128xf32>
    %13 = arith.select %11, %4, %12 : vector<4x128xi1>, vector<4x128xf32>
    %14 = vector.broadcast %8 : vector<1x128xi32> to vector<4x128xi32>
    %15 = arith.cmpi eq, %14, %9 : vector<4x128xi32>
    %cst_9 = arith.constant 0.000000e+00 : f32
    %16 = vector.broadcast %cst_9 : f32 to vector<4x128xf32>
    %17 = arith.select %15, %4, %16 : vector<4x128xi1>, vector<4x128xf32>
    %18 = arith.subf %13, %17 : vector<4x128xf32>
    %c0_10 = arith.constant 0 : index
    %c0_11 = arith.constant 0 : index
    %19 = vector.load %arg6[%c0_10, %c0_11] : memref<4x128xf32, #tpu.memory_space<vmem>>, vector<4x128xf32>
    %20 = arith.addf %19, %18 : vector<4x128xf32>
    %c0_12 = arith.constant 0 : index
    %c0_13 = arith.constant 0 : index
    %21 = vector.load %arg6[%c0_12, %c0_13] : memref<4x128xf32, #tpu.memory_space<vmem>>, vector<4x128xf32>
    tpu.vector_store %arg6[%c0_12, %c0_13], %20 {strides = array<i32>} : memref<4x128xf32, #tpu.memory_space<vmem>>, vector<4x128xf32>,
    %c2_i32 = arith.constant 2 : i32
    %22 = arith.cmpi eq, %arg1, %c2_i32 : i32
    %23 = arith.extui %22 : i1 to i32
    %c0_i32_14 = arith.constant 0 : i32
    %24 = arith.cmpi ne, %23, %c0_i32_14 : i32
    scf.if %24 {
      %c0_15 = arith.constant 0 : index
      %c0_16 = arith.constant 0 : index
      %25 = vector.load %arg6[%c0_15, %c0_16] : memref<4x128xf32, #tpu.memory_space<vmem>>, vector<4x128xf32>
      %26 = vector.shape_cast %25 : vector<4x128xf32> to vector<1x4x128xf32>
      %cst_17 = arith.constant dense<0.000000e+00> : vector<1xf32>
      %27 = vector.multi_reduction <add>, %26, %cst_17 [1, 2] : vector<1x4x128xf32> to vector<1xf32>
      %28 = vector.shape_cast %27 : vector<1xf32> to vector<1x1x1xf32>
      %29 = vector.extract %28[0, 0, 0] : f32 from vector<1x1x1xf32>
      %cst_18 = arith.constant 0.000000e+00 : f32
      %30 = vector.broadcast %cst_18 : f32 to vector<1x1x128xf32>
      %31 = vector.broadcast %29 : f32 to vector<1x1x128xf32>
      %32 = arith.addf %30, %31 : vector<1x1x128xf32>
      %c0_19 = arith.constant 0 : index
      %c0_20 = arith.constant 0 : index
      %c0_21 = arith.constant 0 : index
      %33 = vector.load %arg5[%c0_19, %c0_20, %c0_21] : memref<1x1x128xf32, #tpu.memory_space<vmem>>, vector<1x1x128xf32>
      tpu.vector_store %arg5[%c0_19, %c0_20, %c0_21], %32 {strides = array<i32>} : memref<1x1x128xf32, #tpu.memory_space<vmem>>, vector<1x1x128xf32>,
    } else {
    }
    return
  }
  func.func @transform_0(%arg0: i32, %arg1: i32) -> (i32, i32, i32) {
    %c0_i32 = arith.constant 0 : i32
    %c0_i32_0 = arith.constant 0 : i32
    return %arg0, %c0_i32, %arg1 : i32, i32, i32
  }
  func.func @transform_1(%arg0: i32, %arg1: i32) -> (i32, i32, i32) {
    %c0_i32 = arith.constant 0 : i32
    %c0_i32_0 = arith.constant 0 : i32
    return %arg0, %c0_i32, %arg1 : i32, i32, i32
  }
  func.func @transform_2(%arg0: i32, %arg1: i32) -> (i32, i32, i32) {
    %c0_i32 = arith.constant 0 : i32
    %c0_i32_0 = arith.constant 0 : i32
    return %arg0, %c0_i32, %arg1 : i32, i32, i32
  }
  func.func @transform_3(%arg0: i32, %arg1: i32) -> (i32, i32, i32) {
    %c0_i32 = arith.constant 0 : i32
    %c0_i32_0 = arith.constant 0 : i32
    %c0_i32_1 = arith.constant 0 : i32
    return %arg0, %c0_i32, %c0_i32_0 : i32, i32, i32
  }
}

</mosaic_0001>

<llo_original>
// kernel: tpu_custom_call.1
$region0: #{tpu_custom_call.1}
  #allocation0 [shape = 'u32[]', space=smem, size = 0x4, offset = 0x4, fixed_abs, tag = 'smem constant byte address 0x4 - core index']
  #allocation1 [shape = 'u32[144,128]{1,0:T(1,128)}', space=vmem, size = 0x12000, scoped, tag = 'internal scratch']
  #allocation2 [shape = 'f32[4,128]{1,0:T(4,128)}', space=vmem, size = 0x800, scoped, tag = 'scratch operand']
  %s0 = inlined_call_operand.hbm [shape: f32[2,4,384], index: 0, kind: input, shape index: {}]
  %s1 = inlined_call_operand.hbm [shape: s32[2,1,384], index: 1, kind: input, shape index: {}]
  %s2 = inlined_call_operand.vmem [shape: s32[2,1,384], index: 2, kind: input, shape index: {}]
  %s3 = inlined_call_operand.hbm [shape: f32[2,1,128], index: 3, kind: output, shape index: {}]
  %s4 = sld [smem:[#allocation0]]
  $region61: #{tpu_custom_call.1} parent=0
    _
  %s6 = ssub.s32 1, %s4
  %s7 = scalar_select 0, %s6, %s4
  $region1: #{tpu_custom_call.1} parent=0
    #allocation3 [shape = 'u8[4096]{0}', space=vmem, size = 0x1000, scoped, tag = 'input window, operand 0']
    #allocation4 [shape = 's32[2]{0}', space=sflag, size = 0x8, scoped, tag = 'scoped memory for tpu_custom_call.1']
    #allocation5 [shape = 's32[2]{0}', space=sflag, size = 0x8, scoped, tag = 'scoped memory for tpu_custom_call.1']
    #allocation6 [shape = 'u8[1024]{0}', space=vmem, size = 0x400, scoped, tag = 'input window, operand 1']
    #allocation7 [shape = 's32[2]{0}', space=sflag, size = 0x8, scoped, tag = 'scoped memory for tpu_custom_call.1']
    #allocation8 [shape = 'u8[1024]{0}', space=vmem, size = 0x400, scoped, tag = 'output window, operand 0']
    %8 = vsyncpa [#allocation4], 0
    %s9 = scalar_lea.sflag [#allocation4], 1
    %10 = vsyncpa %s9, 0
    %11 = vsyncpa [#allocation7], 0
    %s12 = scalar_lea.sflag [#allocation7], 1
    %13 = vsyncpa %s12, 0
    %14 = vsyncpa [#allocation5], 0
    %s15 = scalar_lea.sflag [#allocation5], 1
    %16 = vsyncpa %s15, 0
    loop: start=0, step=1, limit=8
    $region2: #{tpu_custom_call.1} parent=1 // loop_pre_header
      _
    $region3: #{tpu_custom_call.1} parent=1 // loop_header
      %s18 = sphi 0, %s22
      %p19 = scmp.ge.s32.totalorder %s18, 8
      %s25 = sphi 0, %s37
      %s26 = sphi 0, %s33
      %s27 = sphi 0, %s25
      %s28 = sphi 0, %s26
      %s29 = sphi 0, %s27
      %s30 = sphi 0, %s28
      %s42 = sphi 0, %s44
      %s45 = sphi 0, %s42
      %s46 = sphi 0, %s45
      %s62 = sphi 0, %s46
      %s70 = sphi 0, %s72
      %s73 = sphi 0, %s70
      %s74 = sphi 0, %s73
      %s90 = sphi 0, %s74
      %s98 = sphi 0, %s100
      %s101 = sphi 0, %s98
      %s102 = sphi 0, %s101
      %s118 = sphi 0, %s102
      %s124 = sphi 0, %s126
      %s127 = sphi 0, %s124
      %s128 = sphi 0, %s127
      %s144 = sphi 0, %s128
    $region4: #{tpu_custom_call.1} parent=1 // loop_header_branch
      %21 = sbr.rel (%p19) target = $region8
    $region5: #{tpu_custom_call.1} parent=1 // loop_body
      %s23 = ssub.s32 %s18, 1
      %s24 = ssub.s32 %s18, 2
      %s31 = sadd.s32 1, %s26
      %p32 = scmp.ge.s32.totalorder %s31, 3
      %s33 = scalar_select %p32, 0, %s31
      %s34 = sadd.s32 1, %s25
      %s35 = scalar_select %p32, %s34, %s25
      %p36 = scmp.ge.s32.totalorder %s35, 2
      %s37 = scalar_select %p36, 0, %s35
      %s38 = ssub.s32 %s25, %s37
      %s39 = ssub.s32 %s26, %s33
      %s40 = sor.u32 %s38, %s39
      %p41 = scmp.eq.s32.totalorder %s40, 0
      %s43 = sadd.s32 %s42, 1
      %s44 = scalar_select %p41, %s42, %s43
      %p47 = pneg %p41
      %p48 = scmp.eq.s32.totalorder %s18, 5
      %p49 = por %p47, %p48
      %p50 = scmp.ne.s32.totalorder %s42, %s45
      %p51 = scmp.eq.s32.totalorder %s18, 0
      %p52 = por %p50, %p51
      %p53 = scmp.ne.s32.totalorder %s42, %s45
      %p54 = scmp.eq.s32.totalorder %s23, 5
      %p55 = por %p53, %p54
      %p56 = scmp.ne.s32.totalorder %s45, %s46
      %p57 = scmp.eq.s32.totalorder %s23, 0
      %p58 = por %p56, %p57
      %p59 = scmp.ne.s32.totalorder %s45, %s46
      %p60 = scmp.eq.s32.totalorder %s24, 5
      %p61 = por %p59, %p60
      %p63 = scmp.ne.s32.totalorder %s46, %s62
      %p64 = scmp.eq.s32.totalorder %s24, 0
      %p65 = por %p63, %p64
      %s66 = ssub.s32 %s25, %s37
      %s67 = ssub.s32 %s26, %s33
      %s68 = sor.u32 %s66, %s67
      %p69 = scmp.eq.s32.totalorder %s68, 0
      %s71 = sadd.s32 %s70, 1
      %s72 = scalar_select %p69, %s70, %s71
      %p75 = pneg %p69
      %p76 = scmp.eq.s32.totalorder %s18, 5
      %p77 = por %p75, %p76
      %p78 = scmp.ne.s32.totalorder %s70, %s73
      %p79 = scmp.eq.s32.totalorder %s18, 0
      %p80 = por %p78, %p79
      %p81 = scmp.ne.s32.totalorder %s70, %s73
      %p82 = scmp.eq.s32.totalorder %s23, 5
      %p83 = por %p81, %p82
      %p84 = scmp.ne.s32.totalorder %s73, %s74
      %p85 = scmp.eq.s32.totalorder %s23, 0
      %p86 = por %p84, %p85
      %p87 = scmp.ne.s32.totalorder %s73, %s74
      %p88 = scmp.eq.s32.totalorder %s24, 5
      %p89 = por %p87, %p88
      %p91 = scmp.ne.s32.totalorder %s74, %s90
      %p92 = scmp.eq.s32.totalorder %s24, 0
      %p93 = por %p91, %p92
      %s94 = ssub.s32 %s25, %s37
      %s95 = ssub.s32 %s26, %s33
      %s96 = sor.u32 %s94, %s95
      %p97 = scmp.eq.s32.totalorder %s96, 0
      %s99 = sadd.s32 %s98, 1
      %s100 = scalar_select %p97, %s98, %s99
      %p103 = pneg %p97
      %p104 = scmp.eq.s32.totalorder %s18, 5
      %p105 = por %p103, %p104
      %p106 = scmp.ne.s32.totalorder %s98, %s101
      %p107 = scmp.eq.s32.totalorder %s18, 0
      %p108 = por %p106, %p107
      %p109 = scmp.ne.s32.totalorder %s98, %s101
      %p110 = scmp.eq.s32.totalorder %s23, 5
      %p111 = por %p109, %p110
      %p112 = scmp.ne.s32.totalorder %s101, %s102
      %p113 = scmp.eq.s32.totalorder %s23, 0
      %p114 = por %p112, %p113
      %p115 = scmp.ne.s32.totalorder %s101, %s102
      %p116 = scmp.eq.s32.totalorder %s24, 5
      %p117 = por %p115, %p116
      %p119 = scmp.ne.s32.totalorder %s102, %s118
      %p120 = scmp.eq.s32.totalorder %s24, 0
      %p121 = por %p119, %p120
      %s122 = ssub.s32 %s25, %s37
      %p123 = scmp.eq.s32.totalorder %s122, 0
      %s125 = sadd.s32 %s124, 1
      %s126 = scalar_select %p123, %s124, %s125
      %p129 = pneg %p123
      %p130 = scmp.eq.s32.totalorder %s18, 5
      %p131 = por %p129, %p130
      %p132 = scmp.ne.s32.totalorder %s124, %s127
      %p133 = scmp.eq.s32.totalorder %s18, 0
      %p134 = por %p132, %p133
      %p135 = scmp.ne.s32.totalorder %s124, %s127
      %p136 = scmp.eq.s32.totalorder %s23, 5
      %p137 = por %p135, %p136
      %p138 = scmp.ne.s32.totalorder %s127, %s128
      %p139 = scmp.eq.s32.totalorder %s23, 0
      %p140 = por %p138, %p139
      %p141 = scmp.ne.s32.totalorder %s127, %s128
      %p142 = scmp.eq.s32.totalorder %s24, 5
      %p143 = por %p141, %p142
      %p145 = scmp.ne.s32.totalorder %s128, %s144
      %p146 = scmp.eq.s32.totalorder %s24, 0
      %p147 = por %p145, %p146
      %p148 = scmp.le.s32.totalorder 1, %s18
      %p149 = scmp.lt.s32.totalorder %s18, 7
      %p150 = pnand %p148, %p149
      %p151 = pneg %p150
      // Predicated region
      $region9: #{tpu_custom_call.1} parent=5 // pred_check
        _
      $region10: #{tpu_custom_call.1} parent=5 // pred_check_branch
        %153 = sbr.rel (%p150) target = $region12
      $region11: #{tpu_custom_call.1} parent=5 // pred_region
        %s154 = ssub.s32 %s18, 1
      $region12: #{tpu_custom_call.1} parent=5 // pred_fallthru
        _
      %p155 = scmp.lt.s32.totalorder %s18, 6
      // Predicated region
      $region13: #{tpu_custom_call.1} parent=5 // pred_check
        %p156 = pneg %p155
      $region14: #{tpu_custom_call.1} parent=5 // pred_check_branch
        %158 = sbr.rel (%p156) target = $region16
      $region15: #{tpu_custom_call.1} parent=5 // pred_region
        // Predicated region
        $region17: #{tpu_custom_call.1} parent=15 // pred_check
          %p159 = pneg %p52
        $region18: #{tpu_custom_call.1} parent=15 // pred_check_branch
          %161 = sbr.rel (%p159) target = $region20
        $region19: #{tpu_custom_call.1} parent=15 // pred_region
          %s162 = sand.u32 %s42, 1
          %s163 = scalar_lea.sflag [#allocation4], %s162
          %s164 = sand.u32 %s42, 1
          %s165 = smul.addr %s164, 4
          %s166 = scalar_lea.vmem [#allocation3], %s165
          %s168 = ssub.s32 64, 64
          %169 = vsyncadd %s163, %s168
          %s170 = smul.addr %s25, 3
          %s171 = sadd.s32 %s26, %s170
          %s172 = smul.addr %s171, 64
          %s173 = scalar_lea.hbm %s0, %s172
          %s175 = sshll.u32 %s166, 4
          %s176 = int_to_ptr.vmem [resolvable:$true] %s175
          %178 = dma.hbm_to_vmem [thread:$0]  %s173, 64, %s176, %s163
        $region20: #{tpu_custom_call.1} parent=15 // pred_fallthru
          _
        // Predicated region
        $region21: #{tpu_custom_call.1} parent=15 // pred_check
          %p179 = pneg %p80
        $region22: #{tpu_custom_call.1} parent=15 // pred_check_branch
          %181 = sbr.rel (%p179) target = $region24
        $region23: #{tpu_custom_call.1} parent=15 // pred_region
          %s182 = sand.u32 %s70, 1
          %s183 = scalar_lea.sflag [#allocation7], %s182
          %s184 = sand.u32 %s70, 1
          %s185 = scalar_lea.vmem [#allocation6], %s184
          %s187 = ssub.s32 16, 16
          %188 = vsyncadd %s183, %s187
          %s189 = smul.addr %s25, 3
          %s190 = sadd.s32 %s26, %s189
          %s191 = smul.addr %s190, 16
          %s192 = scalar_lea.hbm %s1, %s191
          %s194 = sshll.u32 %s185, 4
          %s195 = int_to_ptr.vmem [resolvable:$true] %s194
          %197 = dma.hbm_to_vmem [thread:$0]  %s192, 16, %s195, %s183
        $region24: #{tpu_custom_call.1} parent=15 // pred_fallthru
          _
        // Predicated region
        $region25: #{tpu_custom_call.1} parent=15 // pred_check
          %p198 = pneg %p108
        $region26: #{tpu_custom_call.1} parent=15 // pred_check_branch
          %200 = sbr.rel (%p198) target = $region28
        $region27: #{tpu_custom_call.1} parent=15 // pred_region
          %p201 = scmp.lt.s32.totalorder %s25, 1
          %s202 = scalar_select %p201, %s25, 1
          %p203 = scmp.lt.s32.totalorder %s26, 2
          %s204 = scalar_select %p203, %s26, 2
          %s205 = smul.addr %s202, 3
          %s206 = sadd.s32 %s204, %s205
          %s207 = scalar_lea.vmem %s2, %s206
        $region28: #{tpu_custom_call.1} parent=15 // pred_fallthru
          _
      $region16: #{tpu_custom_call.1} parent=5 // pred_fallthru
        _
      %p208 = scmp.le.s32.totalorder 1, %s18
      %p209 = scmp.lt.s32.totalorder %s18, 7
      %p210 = pnand %p208, %p209
      %p211 = pneg %p210
      // Predicated region
      $region29: #{tpu_custom_call.1} parent=5 // pred_check
        _
      $region30: #{tpu_custom_call.1} parent=5 // pred_check_branch
        %213 = sbr.rel (%p210) target = $region32
      $region31: #{tpu_custom_call.1} parent=5 // pred_region
        %s214 = ssub.s32 %s18, 1
        %s215 = sand.u32 %s45, 1
        %s216 = scalar_lea.sflag [#allocation4], %s215
        %s217 = sand.u32 %s45, 1
        %s218 = smul.addr %s217, 4
        %s219 = scalar_lea.vmem [#allocation3], %s218
        // Predicated region
        $region33: #{tpu_custom_call.1} parent=31 // pred_check
          %p220 = pneg %p58
        $region34: #{tpu_custom_call.1} parent=31 // pred_check_branch
          %222 = sbr.rel (%p220) target = $region36
        $region35: #{tpu_custom_call.1} parent=31 // pred_region
          %223 = dma.done %s216, 64
        $region36: #{tpu_custom_call.1} parent=31 // pred_fallthru
          _
        %s224 = sand.u32 %s73, 1
        %s225 = scalar_lea.sflag [#allocation7], %s224
        %s226 = sand.u32 %s73, 1
        %s227 = scalar_lea.vmem [#allocation6], %s226
        // Predicated region
        $region37: #{tpu_custom_call.1} parent=31 // pred_check
          %p228 = pneg %p86
        $region38: #{tpu_custom_call.1} parent=31 // pred_check_branch
          %230 = sbr.rel (%p228) target = $region40
        $region39: #{tpu_custom_call.1} parent=31 // pred_region
          %231 = dma.done %s225, 16
        $region40: #{tpu_custom_call.1} parent=31 // pred_fallthru
          _
        %s232 = sand.u32 %s45, 1
        %s233 = scalar_lea.sflag [#allocation4], %s232
        %s234 = sand.u32 %s45, 1
        %s235 = smul.addr %s234, 4
        %s236 = scalar_lea.vmem [#allocation3], %s235
        %p237 = pneg %p58
        %p238 = pneg %p55
        %s239 = sand.u32 %s73, 1
        %s240 = scalar_lea.sflag [#allocation7], %s239
        %s241 = sand.u32 %s73, 1
        %s242 = scalar_lea.vmem [#allocation6], %s241
        %p243 = pneg %p86
        %p244 = pneg %p83
        %p245 = scmp.lt.s32.totalorder %s27, 1
        %s246 = scalar_select %p245, %s27, 1
        %p247 = scmp.lt.s32.totalorder %s28, 2
        %s248 = scalar_select %p247, %s28, 2
        %s249 = smul.addr %s246, 3
        %s250 = sadd.s32 %s248, %s249
        %s251 = scalar_lea.vmem %s2, %s250
        %p252 = pneg %p114
        %p253 = pneg %p111
        %p254 = pneg %p140
        %p255 = pneg %p137
        %s256 = sand.u32 %s127, 1
        %s257 = scalar_lea.sflag [#allocation5], %s256
        %s258 = sand.u32 %s127, 1
        %s259 = scalar_lea.vmem [#allocation8], %s258
        %p260 = scmp.lt.s32.totalorder %s27, 1
        %s261 = scalar_select %p260, %s27, 1
        %p262 = scmp.lt.s32.totalorder %s28, 2
        %s263 = scalar_select %p262, %s28, 2
        %s264 = smul.addr %s261, 3
        %s265 = sadd.s32 %s263, %s264
        %s266 = scalar_lea.vmem %s2, %s265
        %p267 = scmp.eq.s32.totalorder %s28, 0
        // Predicated region
        $region41: #{tpu_custom_call.1} parent=31 // pred_check
          %p268 = pneg %p267
        $region42: #{tpu_custom_call.1} parent=31 // pred_check_branch
          %270 = sbr.rel (%p268) target = $region44
        $region43: #{tpu_custom_call.1} parent=31 // pred_region
          %271 = vst [vmem:[#allocation2] sm:$0xf] 0.0
        $region44: #{tpu_custom_call.1} parent=31 // pred_fallthru
          _
        %v272 = vld [vmem:[%s219] sm:$0xf]
        %v273 = vld [vmem:[%s227] sm:$0x1]
        %v274 = vld [vmem:[%s266] sm:$0x1]
        %v275 = vlaneseq
        %v276 = vshrl.u32 %v275, 7
        %v277 = vlaneseq
        %v278 = vshrl.u32 %v277, 7
        %v279 = vsub.s32 0, %v278
        %v280 = vrot.slane %v273, %v279
        %vm281 = vcmp.eq.s32.totalorder %v280, %v276
        %v282 = vsel %vm281, %v272, 0.0
        %v283 = vlaneseq
        %v284 = vshrl.u32 %v283, 7
        %v285 = vsub.s32 0, %v284
        %v286 = vrot.slane %v274, %v285
        %vm287 = vcmp.eq.s32.totalorder %v286, %v276
        %v288 = vsel %vm287, %v272, 0.0
        %v289 = vsub.f32 %v282, %v288
        %v290 = vld [vmem:[#allocation2] sm:$0xf]
        %v291 = vadd.f32 %v290, %v289
        %292 = vst [vmem:[#allocation2] sm:$0xf] %v291
        %p293 = scmp.eq.s32.totalorder %s28, 2
        // Predicated region
        $region45: #{tpu_custom_call.1} parent=31 // pred_check
          %p294 = pneg %p293
        $region46: #{tpu_custom_call.1} parent=31 // pred_check_branch
          %296 = sbr.rel (%p294) target = $region48
        $region47: #{tpu_custom_call.1} parent=31 // pred_region
          %v297 = vld [vmem:[#allocation2] sm:$0xf]
          %vm298 = vcmask 1043456
          %v299 = vsel %vm298, %v297, 0.0
          %300 = vadd.xlane.f32.xlu0 %v299
          %v301 = vpop.xlane.xlu0 %300
          %v302 = vrot.slane %v301, 4
          %v303 = vadd.f32 %v301, %v302
          %v304 = vrot.slane %v303, 2
          %v305 = vadd.f32 %v303, %v304
          %v306 = vrot.slane %v305, 1
          %v307 = vadd.f32 %v305, %v306
          %s308 = vtos %v307
          %v309 = vstv %s308
          %v310 = vadd.f32 %v309, 0.0
          %311 = vst [vmem:[%s259] sm:$0x1] %v310
        $region48: #{tpu_custom_call.1} parent=31 // pred_fallthru
          _
        %s312 = sand.u32 %s127, 1
        %s313 = scalar_lea.sflag [#allocation5], %s312
        %s314 = sand.u32 %s127, 1
        %s315 = scalar_lea.vmem [#allocation8], %s314
        // Predicated region
        $region49: #{tpu_custom_call.1} parent=31 // pred_check
          %p316 = pneg %p137
        $region50: #{tpu_custom_call.1} parent=31 // pred_check_branch
          %318 = sbr.rel (%p316) target = $region52
        $region51: #{tpu_custom_call.1} parent=31 // pred_region
          %s320 = ssub.s32 16, 16
          %321 = vsyncadd %s313, %s320
          %s322 = smul.addr %s27, 16
          %s323 = scalar_lea.hbm %s3, %s322
          %s325 = sshll.u32 %s315, 4
          %s326 = int_to_ptr.vmem [resolvable:$true] %s325
          %328 = dma.vmem_to_hbm [thread:$0]  %s326, 16, %s323, %s313
        $region52: #{tpu_custom_call.1} parent=31 // pred_fallthru
          _
      $region32: #{tpu_custom_call.1} parent=5 // pred_fallthru
        _
      %p329 = scmp.le.s32.totalorder 2, %s18
      // Predicated region
      $region53: #{tpu_custom_call.1} parent=5 // pred_check
        %p330 = pneg %p329
      $region54: #{tpu_custom_call.1} parent=5 // pred_check_branch
        %332 = sbr.rel (%p330) target = $region56
      $region55: #{tpu_custom_call.1} parent=5 // pred_region
        %s333 = ssub.s32 %s18, 2
        // Predicated region
        $region57: #{tpu_custom_call.1} parent=55 // pred_check
          %p334 = pneg %p143
        $region58: #{tpu_custom_call.1} parent=55 // pred_check_branch
          %336 = sbr.rel (%p334) target = $region60
        $region59: #{tpu_custom_call.1} parent=55 // pred_region
          %s337 = sand.u32 %s128, 1
          %s338 = scalar_lea.sflag [#allocation5], %s337
          %s339 = sand.u32 %s128, 1
          %s340 = scalar_lea.vmem [#allocation8], %s339
          %341 = dma.done %s338, 16
        $region60: #{tpu_custom_call.1} parent=55 // pred_fallthru
          _
      $region56: #{tpu_custom_call.1} parent=5 // pred_fallthru
        _
    $region6: #{tpu_custom_call.1} parent=1 // loop_footer
      %s22 = sadd.s32 1, %s18
    $region7: #{tpu_custom_call.1} parent=1 // loop_footer_branch
      %17 = sbr.rel target = $region3
    $region8: #{tpu_custom_call.1} parent=1 // loop_exit
      _
    %342 = vsyncpa [#allocation4], 1
    %s343 = scalar_lea.sflag [#allocation4], 1
    %344 = vsyncpa %s343, 1
    %345 = vsyncpa [#allocation7], 1
    %s346 = scalar_lea.sflag [#allocation7], 1
    %347 = vsyncpa %s346, 1
    %348 = vsyncpa [#allocation5], 1
    %s349 = scalar_lea.sflag [#allocation5], 1
    %350 = vsyncpa %s349, 1

</llo_original>
